<compile_context>
chip_gen: v7x
topology: tpu7x:2x2x1
jax: 0.10.0
libtpu: 0.0.40
codegen_flags: <defaults>
</compile_context>

<pallas_src>
import functools

import jax
import jax.numpy as jnp
from jax.experimental import pallas as pl
from jax.experimental.pallas import tpu as pltpu


# ----------------------------- Pallas kernel --------------------------------
def decoder_kernel(enc_ref, h0_ref, c0_ref,
                   w_gates_ref, w_fc_ref, bias_ref,
                   out_ref, xh_ref, *, hidden_size, feat_size):
    H, F = hidden_size, feat_size
    h0 = h0_ref[...]                                         # (1, H)
    c0 = c0_ref[...]                                         # (1, H)

    # ---- attention application ---------------------------------------------
    # Softmax over a size-1 axis is identically 1.0, so
    # bmm(enc^T, attn_weights) == sum of encoder hiddens over the sequence.
    x = jnp.sum(enc_ref[...], axis=0, keepdims=True)         # (1, F)

    # ---- single-step LSTM with fused input/hidden matmul --------------------
    # Assemble [x | h0] in VMEM scratch so the gate computation is one MXU pass
    # with K = F + H instead of two passes with K = F and K = H.
    xh_ref[:, :F] = x
    xh_ref[:, F:] = h0
    gates = (jnp.dot(xh_ref[...], w_gates_ref[...],
                     preferred_element_type=jnp.float32)
             + bias_ref[:, :4 * H])                          # (1, 4H)

    # Gate columns were permuted at param-prep time to [i | f | o | g]:
    # one wide sigmoid over 3H lanes, one tanh over H lanes.
    sig = jax.nn.sigmoid(gates[:, :3 * H])                   # (1, 3H) = [i|f|o]
    g_g = jnp.tanh(gates[:, 3 * H:])                         # (1, H)
    i_g = sig[:, :H]
    f_g = sig[:, H:2 * H]
    o_g = sig[:, 2 * H:]
    c_new = f_g * c0 + i_g * g_g
    h_new = o_g * jnp.tanh(c_new)                            # (1, H)

    # ---- final fc: Linear(decoder_hidden_size -> num_classes) ---------------
    out_ref[...] = (jnp.dot(h_new, w_fc_ref[...],
                            preferred_element_type=jnp.float32)
                    + bias_ref[:, 4 * H:])                   # (1, C)


# --------------------- one-time parameter preparation ------------------------
def prepare_decoder_params(params, hidden_size):
    """Hoisted layout/precision prep (transposes, casts, gate reorder, fusion).

    Run once; `decoder_forward` then receives kernel-ready arrays so the
    per-call wrapper adds no XLA transpose/concat/cast ops.
    The attention Linear (w_attn / b_attn) is dead code (softmax over a size-1
    axis) and is intentionally not used.
    """
    f32 = jnp.float32
    H = hidden_size

    def reorder(w):
        # torch LSTM gate order [i | f | g | o]  ->  [i | f | o | g]
        return jnp.concatenate([w[:H], w[H:2 * H], w[3 * H:], w[2 * H:3 * H]],
                               axis=0)

    w_ih = reorder(params["w_ih"].astype(f32))               # (4H, F)
    w_hh = reorder(params["w_hh"].astype(f32))               # (4H, H)
    # fused gate weight: gates = [x | h0] @ w_gates
    w_gates = jnp.concatenate([w_ih.T, w_hh.T], axis=0)      # (F+H, 4H)

    b_lstm = reorder((params["b_ih"] + params["b_hh"]).astype(f32))  # (4H,)
    w_fc = params["w_fc"].T.astype(f32)                      # (H, C)
    # single bias slab: [lstm gate bias | fc bias]
    bias = jnp.concatenate([b_lstm, params["b_fc"].astype(f32)]).reshape(1, -1)

    return {"w_gates": w_gates, "w_fc": w_fc, "bias": bias}


# ------------------------------- wrapper -------------------------------------
def decoder_forward(encoder_hiddens, hidden, c, prepped):
    """encoder_hiddens: (S, B=1, F); hidden/c: (L=1, B=1, H). Returns (1, C)."""
    S, B, F = encoder_hiddens.shape
    H = hidden.shape[-1]
    n_classes = prepped["w_fc"].shape[-1]

    f32 = jnp.float32
    enc2d = encoder_hiddens.reshape(S, F).astype(f32)        # squeeze batch=1
    h0 = hidden.reshape(1, H).astype(f32)
    c0 = c.reshape(1, H).astype(f32)

    vmem = functools.partial(pl.BlockSpec, memory_space=pltpu.MemorySpace.VMEM)
    kernel = functools.partial(decoder_kernel, hidden_size=H, feat_size=F)

    out = pl.pallas_call(
        kernel,
        out_shape=jax.ShapeDtypeStruct((1, n_classes), jnp.float32),
        in_specs=[vmem() for _ in range(6)],
        out_specs=vmem(),
        scratch_shapes=[pltpu.VMEM((1, F + H), jnp.float32)],
    )(enc2d, h0, c0, prepped["w_gates"], prepped["w_fc"], prepped["bias"])
    # torch: out.view(seq_out * batch, dec_hidden) -> fc  == (1*1, num_classes)
    return out


# ------------------------- pure-JAX reference --------------------------------
def decoder_ref(encoder_hiddens, hidden, c, params):
    """Faithful translation of the torch forward (keeps the softmax path)."""
    S, B, F = encoder_hiddens.shape
    H = hidden.shape[-1]
    h0, c0 = hidden[0], c[0]
    ws = []
    for i in range(S):
        inp = jnp.concatenate([h0, c0, encoder_hiddens[i]], axis=1)
        s = inp @ params["w_attn"].T + params["b_attn"]
        w = jax.nn.softmax(s, axis=1)            # size-1 axis -> ones
        ws.append(w[:, 0])
    attn_w = jnp.stack(ws, axis=1)[..., None]    # (B, S, 1)
    enc_t = jnp.transpose(encoder_hiddens, (1, 2, 0))  # (B, F, S)
    x = jnp.matmul(enc_t, attn_w)[..., 0]        # (B, F)
    gates = (x @ params["w_ih"].T + h0 @ params["w_hh"].T
             + params["b_ih"] + params["b_hh"])
    i_g = jax.nn.sigmoid(gates[:, :H])
    f_g = jax.nn.sigmoid(gates[:, H:2 * H])
    g_g = jnp.tanh(gates[:, 2 * H:3 * H])
    o_g = jax.nn.sigmoid(gates[:, 3 * H:])
    c_new = f_g * c0 + i_g * g_g
    h_new = o_g * jnp.tanh(c_new)
    return h_new @ params["w_fc"].T + params["b_fc"]


# ---------------------------------- main --------------------------------------
if __name__ == "__main__":
    # module config
    encoder_hidden_size = 32
    num_enc_direction = 1
    decoder_hidden_size = 32
    num_layer_dec = 1
    num_classes = 16
    seq_len = 8
    batch = 1                                    # fixed by the torch module

    F = encoder_hidden_size * num_enc_direction
    H = decoder_hidden_size
    attn_in = 2 * H + F

    key = jax.random.PRNGKey(0)
    keys = jax.random.split(key, 10)
    scale = 0.1
    params = {
        "w_attn": scale * jax.random.normal(keys[0], (1, attn_in), jnp.float32),
        "b_attn": scale * jax.random.normal(keys[1], (1,), jnp.float32),
        "w_ih": scale * jax.random.normal(keys[2], (4 * H, F), jnp.float32),
        "w_hh": scale * jax.random.normal(keys[3], (4 * H, H), jnp.float32),
        "b_ih": scale * jax.random.normal(keys[4], (4 * H,), jnp.float32),
        "b_hh": scale * jax.random.normal(keys[5], (4 * H,), jnp.float32),
        "w_fc": scale * jax.random.normal(keys[6], (num_classes, H), jnp.float32),
        "b_fc": scale * jax.random.normal(keys[7], (num_classes,), jnp.float32),
    }

    encoder_hiddens = jax.random.normal(keys[8], (seq_len, batch, F), jnp.float32)
    hc_key1, hc_key2 = jax.random.split(keys[9])
    hidden = jax.random.normal(hc_key1, (num_layer_dec, batch, H), jnp.float32)
    c = jax.random.normal(hc_key2, (num_layer_dec, batch, H), jnp.float32)

    # One-time parameter preparation (hoisted out of the per-call path).
    prepped = prepare_decoder_params(params, H)
    prepped = {k: jax.block_until_ready(v) for k, v in prepped.items()}

    out = decoder_forward(encoder_hiddens, hidden, c, prepped)
    out = jax.block_until_ready(out)

    ref = decoder_ref(encoder_hiddens, hidden, c, params)
    assert out.shape == (1 * batch, num_classes), out.shape
    assert jnp.allclose(out, ref, atol=1e-4, rtol=1e-4), (out, ref)
    print("KERNEL_OK")
</pallas_src>

<mosaic_0001>
module attributes {stable_mosaic.version = 11 : i64} {
  func.func @decoder_kernel(%arg0: memref<8x32xf32, #tpu.memory_space<vmem>>, %arg1: memref<1x32xf32, #tpu.memory_space<vmem>>, %arg2: memref<1x32xf32, #tpu.memory_space<vmem>>, %arg3: memref<64x128xf32, #tpu.memory_space<vmem>>, %arg4: memref<32x16xf32, #tpu.memory_space<vmem>>, %arg5: memref<1x144xf32, #tpu.memory_space<vmem>>, %arg6: memref<1x16xf32, #tpu.memory_space<vmem>>, %arg7: memref<1x64xf32, #tpu.memory_space<vmem>>) attributes {dimension_semantics = [], scalar_prefetch = 0 : i64, scratch_operands = 1 : i64, tpu.core_type = #tpu.core_type<tc>} {
    %c0 = arith.constant 0 : index
    %c0_0 = arith.constant 0 : index
    %0 = vector.load %arg1[%c0, %c0_0] : memref<1x32xf32, #tpu.memory_space<vmem>>, vector<1x32xf32>
    %c0_1 = arith.constant 0 : index
    %c0_2 = arith.constant 0 : index
    %1 = vector.load %arg2[%c0_1, %c0_2] : memref<1x32xf32, #tpu.memory_space<vmem>>, vector<1x32xf32>
    %c0_3 = arith.constant 0 : index
    %c0_4 = arith.constant 0 : index
    %2 = vector.load %arg0[%c0_3, %c0_4] : memref<8x32xf32, #tpu.memory_space<vmem>>, vector<8x32xf32>
    %cst = arith.constant dense<0.000000e+00> : vector<32xf32>
    %3 = vector.multi_reduction <add>, %2, %cst [0] : vector<8x32xf32> to vector<32xf32>
    %4 = vector.shape_cast %3 : vector<32xf32> to vector<1x32xf32>
    %c0_5 = arith.constant 0 : index
    %c0_6 = arith.constant 0 : index
    %5 = vector.load %arg7[%c0_5, %c0_6] : memref<1x64xf32, #tpu.memory_space<vmem>>, vector<1x32xf32>
    tpu.vector_store %arg7[%c0_5, %c0_6], %4 {strides = array<i32>} : memref<1x64xf32, #tpu.memory_space<vmem>>, vector<1x32xf32>,
    %c0_7 = arith.constant 0 : index
    %c32 = arith.constant 32 : index
    %6 = vector.load %arg7[%c0_7, %c32] : memref<1x64xf32, #tpu.memory_space<vmem>>, vector<1x32xf32>
    tpu.vector_store %arg7[%c0_7, %c32], %0 {strides = array<i32>} : memref<1x64xf32, #tpu.memory_space<vmem>>, vector<1x32xf32>,
    %c0_8 = arith.constant 0 : index
    %c0_9 = arith.constant 0 : index
    %7 = vector.load %arg7[%c0_8, %c0_9] : memref<1x64xf32, #tpu.memory_space<vmem>>, vector<1x64xf32>
    %c0_10 = arith.constant 0 : index
    %c0_11 = arith.constant 0 : index
    %8 = vector.load %arg3[%c0_10, %c0_11] : memref<64x128xf32, #tpu.memory_space<vmem>>, vector<64x128xf32>
    %cst_12 = arith.constant dense<0.000000e+00> : vector<1x128xf32>
    %9 = tpu.matmul %7, %8, %cst_12 {dimension_numbers = #tpu.dot_dimension_numbers<[1], [0], [0], [1], [0, 0, 1, 1], [], []>} : vector<1x64xf32>, vector<64x128xf32>, vector<1x128xf32> -> vector<1x128xf32>
    %c0_13 = arith.constant 0 : index
    %c0_14 = arith.constant 0 : index
    %10 = vector.load %arg5[%c0_13, %c0_14] : memref<1x144xf32, #tpu.memory_space<vmem>>, vector<1x128xf32>
    %11 = arith.addf %9, %10 : vector<1x128xf32>
    %12 = vector.extract_strided_slice %11 {offsets = [0, 0], sizes = [1, 96], strides = [1, 1]} : vector<1x128xf32> to vector<1x96xf32>
    %13 = arith.negf %12 : vector<1x96xf32>
    %14 = math.exp %13 : vector<1x96xf32>
    %cst_15 = arith.constant 1.000000e+00 : f32
    %15 = vector.broadcast %cst_15 : f32 to vector<1x96xf32>
    %16 = arith.addf %15, %14 : vector<1x96xf32>
    %17 = arith.divf %15, %16 : vector<1x96xf32>
    %18 = vector.extract_strided_slice %11 {offsets = [0, 96], sizes = [1, 32], strides = [1, 1]} : vector<1x128xf32> to vector<1x32xf32>
    %19 = math.tanh %18 : vector<1x32xf32>
    %20 = vector.extract_strided_slice %17 {offsets = [0, 0], sizes = [1, 32], strides = [1, 1]} : vector<1x96xf32> to vector<1x32xf32>
    %21 = vector.extract_strided_slice %17 {offsets = [0, 32], sizes = [1, 32], strides = [1, 1]} : vector<1x96xf32> to vector<1x32xf32>
    %22 = vector.extract_strided_slice %17 {offsets = [0, 64], sizes = [1, 32], strides = [1, 1]} : vector<1x96xf32> to vector<1x32xf32>
    %23 = arith.mulf %21, %1 : vector<1x32xf32>
    %24 = arith.mulf %20, %19 : vector<1x32xf32>
    %25 = arith.addf %23, %24 : vector<1x32xf32>
    %26 = math.tanh %25 : vector<1x32xf32>
    %27 = arith.mulf %22, %26 : vector<1x32xf32>
    %c0_16 = arith.constant 0 : index
    %c0_17 = arith.constant 0 : index
    %28 = vector.load %arg4[%c0_16, %c0_17] : memref<32x16xf32, #tpu.memory_space<vmem>>, vector<32x16xf32>
    %cst_18 = arith.constant dense<0.000000e+00> : vector<1x16xf32>
    %29 = tpu.matmul %27, %28, %cst_18 {dimension_numbers = #tpu.dot_dimension_numbers<[1], [0], [0], [1], [0, 0, 1, 1], [], []>} : vector<1x32xf32>, vector<32x16xf32>, vector<1x16xf32> -> vector<1x16xf32>
    %c0_19 = arith.constant 0 : index
    %c128 = arith.constant 128 : index
    %30 = vector.load %arg5[%c0_19, %c128] : memref<1x144xf32, #tpu.memory_space<vmem>>, vector<1x16xf32>
    %31 = arith.addf %29, %30 : vector<1x16xf32>
    %c0_20 = arith.constant 0 : index
    %c0_21 = arith.constant 0 : index
    %32 = vector.load %arg6[%c0_20, %c0_21] : memref<1x16xf32, #tpu.memory_space<vmem>>, vector<1x16xf32>
    tpu.vector_store %arg6[%c0_20, %c0_21], %31 {strides = array<i32>} : memref<1x16xf32, #tpu.memory_space<vmem>>, vector<1x16xf32>,
    return
  }
}

</mosaic_0001>

<llo_original>
// kernel: tpu_custom_call.1
$region0: #{tpu_custom_call.1}
  #allocation0 [shape = 'u32[]', space=smem, size = 0x4, offset = 0x4, fixed_abs, tag = 'smem constant byte address 0x4 - core index']
  #allocation1 [shape = 'u32[144,128]{1,0:T(1,128)}', space=vmem, size = 0x12000, scoped, tag = 'internal scratch']
  #allocation2 [shape = 'f32[1,64]{1,0:T(1,128)}', space=vmem, size = 0x200, scoped, tag = 'scratch operand']
  %s0 = inlined_call_operand.vmem [shape: f32[8,32], index: 0, kind: input, shape index: {}]
  %s1 = inlined_call_operand.vmem [shape: f32[1,32], index: 1, kind: input, shape index: {}]
  %s2 = inlined_call_operand.vmem [shape: f32[1,32], index: 2, kind: input, shape index: {}]
  %s3 = inlined_call_operand.hbm [shape: f32[64,128], index: 3, kind: input, shape index: {}]
  %s4 = inlined_call_operand.vmem [shape: f32[32,16], index: 4, kind: input, shape index: {}]
  %s5 = inlined_call_operand.vmem [shape: f32[1,144], index: 5, kind: input, shape index: {}]
  %s6 = inlined_call_operand.hbm [shape: f32[1,16], index: 6, kind: output, shape index: {}]
  %s7 = sld [smem:[#allocation0]]
  $region38: #{tpu_custom_call.1} parent=0
    _
  %s9 = ssub.s32 1, %s7
  %s10 = scalar_select 0, %s9, %s7
  $region1: #{tpu_custom_call.1} parent=0
    #allocation3 [shape = 'u8[32768]{0}', space=vmem, size = 0x8000, scoped, tag = 'input window, operand 3, single buffered']
    #allocation4 [shape = 's32[1]{0}', space=sflag, size = 0x4, scoped, tag = 'scoped memory for tpu_custom_call.1']
    #allocation5 [shape = 's32[1]{0}', space=sflag, size = 0x4, scoped, tag = 'scoped memory for tpu_custom_call.1']
    #allocation6 [shape = 'u8[512]{0}', space=vmem, size = 0x400, scoped, tag = 'output window, operand 0, single buffered']
    %11 = vsyncpa [#allocation4], 0
    %12 = vsyncpa [#allocation5], 0
    // Predicated region
    $region2: #{tpu_custom_call.1} parent=1 // pred_check
      _
    $region3: #{tpu_custom_call.1} parent=1 // pred_check_branch
      %14 = sbr.rel (0) target = $region5
    $region4: #{tpu_custom_call.1} parent=1 // pred_region
      _
    $region5: #{tpu_custom_call.1} parent=1 // pred_fallthru
      _
    // Predicated region
    $region6: #{tpu_custom_call.1} parent=1 // pred_check
      _
    $region7: #{tpu_custom_call.1} parent=1 // pred_check_branch
      %16 = sbr.rel (0) target = $region9
    $region8: #{tpu_custom_call.1} parent=1 // pred_region
      _
    $region9: #{tpu_custom_call.1} parent=1 // pred_fallthru
      _
    // Predicated region
    $region10: #{tpu_custom_call.1} parent=1 // pred_check
      _
    $region11: #{tpu_custom_call.1} parent=1 // pred_check_branch
      %18 = sbr.rel (0) target = $region13
    $region12: #{tpu_custom_call.1} parent=1 // pred_region
      _
    $region13: #{tpu_custom_call.1} parent=1 // pred_fallthru
      _
    // Predicated region
    $region14: #{tpu_custom_call.1} parent=1 // pred_check
      _
    $region15: #{tpu_custom_call.1} parent=1 // pred_check_branch
      %20 = sbr.rel (0) target = $region17
    $region16: #{tpu_custom_call.1} parent=1 // pred_region
      %s22 = ssub.s32 1024, 1024
      %23 = vsyncadd [#allocation4], %s22
      %s24 = sshll.u32 [#allocation3], 4
      %s25 = int_to_ptr.vmem [resolvable:$true] %s24
      %30 = dma.hbm_to_vmem [thread:$0]  %s3, 1024, %s25, [#allocation4], 128, 128, 8
    $region17: #{tpu_custom_call.1} parent=1 // pred_fallthru
      _
    // Predicated region
    $region18: #{tpu_custom_call.1} parent=1 // pred_check
      _
    $region19: #{tpu_custom_call.1} parent=1 // pred_check_branch
      %32 = sbr.rel (0) target = $region21
    $region20: #{tpu_custom_call.1} parent=1 // pred_region
      _
    $region21: #{tpu_custom_call.1} parent=1 // pred_fallthru
      _
    // Predicated region
    $region22: #{tpu_custom_call.1} parent=1 // pred_check
      _
    $region23: #{tpu_custom_call.1} parent=1 // pred_check_branch
      %34 = sbr.rel (0) target = $region25
    $region24: #{tpu_custom_call.1} parent=1 // pred_region
      _
    $region25: #{tpu_custom_call.1} parent=1 // pred_fallthru
      _
    // Predicated region
    $region26: #{tpu_custom_call.1} parent=1 // pred_check
      _
    $region27: #{tpu_custom_call.1} parent=1 // pred_check_branch
      %36 = sbr.rel (0) target = $region29
    $region28: #{tpu_custom_call.1} parent=1 // pred_region
      %37 = dma.done [#allocation4], 1024
    $region29: #{tpu_custom_call.1} parent=1 // pred_fallthru
      _
    %v38 = vld [vmem:[%s1] sm:$0x1]
    %v39 = vld [vmem:[%s2] sm:$0x1]
    %v40 = vld [vmem:[%s0] sm:$0xff]
    %vm41 = vcmask 261120
    %v42 = vsel %vm41, %v40, 0.0
    %v43 = vrot.slane %v42, 4
    %v44 = vadd.f32 %v42, %v43
    %v45 = vrot.slane %v44, 2
    %v46 = vadd.f32 %v44, %v45
    %v47 = vrot.slane %v46, 1
    %v48 = vadd.f32 %v46, %v47
    %vm49 = vcmask 253952
    %50 = vst.msk [vmem:[#allocation2] sm:$0x1] %vm49, %v48
    %v52 = vlaneseq
    %v53 = vshrl.u32 %v52, 7
    %v54 = vsub.s32 0, %v53
    %v55 = vrot.slane %v38, %v54
    %56 = vrot.lane.b32.xlu0 %v55, 32
    %v57 = vpop.permute.xlu0 %56
    %vm59 = vcmask 516352
    %60 = vst.msk [vmem:[#allocation2] sm:$0x1] %vm59, %v57
    %v61 = vld [vmem:[#allocation2] sm:$0x1]
    %v62 = vld [vmem:[#allocation3] sm:$0xff]
    %v63 = vld [vmem:[#allocation3 + $0x8] sm:$0xff]
    %v64 = vld [vmem:[#allocation3 + $0x10] sm:$0xff]
    %v65 = vld [vmem:[#allocation3 + $0x18] sm:$0xff]
    %v66 = vld [vmem:[#allocation3 + $0x20] sm:$0xff]
    %v67 = vld [vmem:[#allocation3 + $0x28] sm:$0xff]
    %v68 = vld [vmem:[#allocation3 + $0x30] sm:$0xff]
    %v69 = vld [vmem:[#allocation3 + $0x38] sm:$0xff]
    %v70 = vld [vmem:[%s5] sm:$0x1]
    %vm71 = vcmask 523264
    %v73 = vsel %vm71, %v61, 0
    %75 = vmatprep.subr.mxu0 0.0
    %76 = vmatpush1.msra.mxu0 %v62
    %77 = vmatprep.subr.mxu0 0.0
    %78 = vmatpush1.msra.mxu0 %v63
    %79 = vmatprep.subr.mxu0 0.0
    %80 = vmatpush1.msra.mxu0 %v64
    %81 = vmatprep.subr.mxu0 0.0
    %82 = vmatpush1.msra.mxu0 %v65
    %83 = vmatprep.subr.mxu0 0.0
    %84 = vmatpush1.msra.mxu0 %v66
    %85 = vmatprep.subr.mxu0 0.0
    %86 = vmatpush1.msra.mxu0 %v67
    %87 = vmatprep.subr.mxu0 0.0
    %88 = vmatpush1.msra.mxu0 %v68
    %89 = vmatprep.subr.mxu0 0.0
    %90 = vmatpush1.msra.mxu0 %v69
    %91 = vmatprep.subr.mxu0 0.0
    %92 = vmatpush1.msra.mxu0 0.0
    %93 = vmatprep.subr.mxu0 0.0
    %94 = vmatpush1.msra.mxu0 0.0
    %95 = vmatprep.subr.mxu0 0.0
    %96 = vmatpush1.msra.mxu0 0.0
    %97 = vmatprep.subr.mxu0 0.0
    %98 = vmatpush1.msra.mxu0 0.0
    %99 = vmatprep.subr.mxu0 0.0
    %100 = vmatpush1.msra.mxu0 0.0
    %101 = vmatprep.subr.mxu0 0.0
    %102 = vmatpush1.msra.mxu0 0.0
    %103 = vmatprep.subr.mxu0 0.0
    %104 = vmatpush1.msra.mxu0 0.0
    %105 = vmatprep.subr.mxu0 0.0
    %106 = vmatpush1.msra.mxu0 0.0
    %107 = vmatprep.subr.mxu0 0.0
    %108 = vmatpush1.msra.mxu0 0.0
    %109 = vmatprep.subr.mxu0 0.0
    %110 = vmatpush1.msra.mxu0 0.0
    %111 = vmatprep.subr.mxu0 0.0
    %112 = vmatpush1.msra.mxu0 0.0
    %113 = vmatprep.subr.mxu0 0.0
    %114 = vmatpush1.msra.mxu0 0.0
    %115 = vmatprep.subr.mxu0 0.0
    %116 = vmatpush1.msra.mxu0 0.0
    %117 = vmatprep.subr.mxu0 0.0
    %118 = vmatpush1.msra.mxu0 0.0
    %119 = vmatprep.subr.mxu0 0.0
    %120 = vmatpush1.msra.mxu0 0.0
    %121 = vmatprep.subr.mxu0 0.0
    %122 = vmatpush1.msra.mxu0 0.0
    %123 = vmatprep.subr.mxu0 0.0
    %124 = vmatpush1.msra.mxu0 0.0
    %125 = vmatprep.subr.mxu0 0.0
    %126 = vmatpush1.msra.mxu0 0.0
    %127 = vmatprep.subr.mxu0 0.0
    %128 = vmatpush1.msra.mxu0 0.0
    %129 = vmatprep.subr.mxu0 0.0
    %130 = vmatpush1.msra.mxu0 0.0
    %131 = vmatprep.subr.mxu0 0.0
    %132 = vmatpush1.msra.mxu0 0.0
    %133 = vmatprep.subr.mxu0 0.0
    %134 = vmatpush1.msra.mxu0 0.0
    %135 = vmatprep.subr.mxu0 0.0
    %136 = vmatpush1.msra.mxu0 0.0
    %137 = vmatprep.subr.mxu0 0.0
    %138 = vmatpush1.msra.mxu0 0.0
    %139 = vmatprep.mubr.f32.mxu0 0.0
    %140 = vmatmul.mubr.f32.gmra.mrb[0].mxu0 %v73
    %v141 = vpop.f32.mrb[0].mxu0
    %v142 = vadd.f32 %v70, %v141
    %v143 = vpop.f32.mrb[0].mxu0
    %144 = vdwg.mxu0
    %v145 = vxor.u32 %v142, 2147483648
    %v146 = vmul.f32 %v145, 1.442695
    %v147 = vpow.pop %v146
    %v148 = vadd.f32 %v147, 1.0
    %v149 = vrcp.pop %v148
    %v150 = vmul.f32 1.0, %v149
    %v151 = vtanh.pop %v142
    %v153 = vlaneseq
    %v154 = vshrl.u32 %v153, 7
    %v155 = vsub.s32 0, %v154
    %v156 = vrot.slane %v39, %v155
    %157 = vrot.lane.b32.xlu0 %v156, 32
    %v158 = vpop.permute.xlu0 %157
    %v160 = vmul.f32 %v150, %v158
    %162 = vrot.lane.b32.xlu0 %v151, 32
    %v163 = vpop.permute.xlu0 %162
    %v165 = vmul.f32 %v150, %v163
    %167 = vrot.lane.b32.xlu0 %v165, 32
    %v168 = vpop.permute.xlu0 %167
    %v170 = vadd.f32 %v160, %v168
    %v171 = vtanh.pop %v170
    %173 = vrot.lane.b32.xlu0 %v171, 32
    %v174 = vpop.permute.xlu0 %173
    %v176 = vmul.f32 %v150, %v174
    %v177 = vld [vmem:[%s4] sm:$0xff]
    %v178 = vld [vmem:[%s4 + $0x8] sm:$0xff]
    %v179 = vld [vmem:[%s4 + $0x10] sm:$0xff]
    %v180 = vld [vmem:[%s4 + $0x18] sm:$0xff]
    %v181 = vld [vmem:[%s5 + $0x1] sm:$0x1]
    %183 = vrot.lane.b32.xlu0 %v176, 64
    %v184 = vpop.permute.xlu0 %183
    %v185 = vsel %vm41, %v184, 0
    %187 = vmatprep.subr.mxu0 0.0
    %188 = vmatpush1.msra.mxu0 %v177
    %189 = vmatprep.subr.mxu0 0.0
    %190 = vmatpush1.msra.mxu0 %v178
    %191 = vmatprep.subr.mxu0 0.0
    %192 = vmatpush1.msra.mxu0 %v179
    %193 = vmatprep.subr.mxu0 0.0
    %194 = vmatpush1.msra.mxu0 %v180
    %195 = vmatprep.subr.mxu0 0.0
    %196 = vmatpush1.msra.mxu0 0.0
    %197 = vmatprep.subr.mxu0 0.0
    %198 = vmatpush1.msra.mxu0 0.0
    %199 = vmatprep.subr.mxu0 0.0
    %200 = vmatpush1.msra.mxu0 0.0
    %201 = vmatprep.subr.mxu0 0.0
    %202 = vmatpush1.msra.mxu0 0.0
    %203 = vmatprep.subr.mxu0 0.0
    %204 = vmatpush1.msra.mxu0 0.0
    %205 = vmatprep.subr.mxu0 0.0
    %206 = vmatpush1.msra.mxu0 0.0
    %207 = vmatprep.subr.mxu0 0.0
    %208 = vmatpush1.msra.mxu0 0.0
    %209 = vmatprep.subr.mxu0 0.0
    %210 = vmatpush1.msra.mxu0 0.0
    %211 = vmatprep.subr.mxu0 0.0
    %212 = vmatpush1.msra.mxu0 0.0
    %213 = vmatprep.subr.mxu0 0.0
    %214 = vmatpush1.msra.mxu0 0.0
    %215 = vmatprep.subr.mxu0 0.0
    %216 = vmatpush1.msra.mxu0 0.0
    %217 = vmatprep.subr.mxu0 0.0
    %218 = vmatpush1.msra.mxu0 0.0
    %219 = vmatprep.subr.mxu0 0.0
    %220 = vmatpush1.msra.mxu0 0.0
    %221 = vmatprep.subr.mxu0 0.0
    %222 = vmatpush1.msra.mxu0 0.0
    %223 = vmatprep.subr.mxu0 0.0
    %224 = vmatpush1.msra.mxu0 0.0
    %225 = vmatprep.subr.mxu0 0.0
    %226 = vmatpush1.msra.mxu0 0.0
    %227 = vmatprep.subr.mxu0 0.0
    %228 = vmatpush1.msra.mxu0 0.0
    %229 = vmatprep.subr.mxu0 0.0
    %230 = vmatpush1.msra.mxu0 0.0
    %231 = vmatprep.subr.mxu0 0.0
    %232 = vmatpush1.msra.mxu0 0.0
    %233 = vmatprep.subr.mxu0 0.0
    %234 = vmatpush1.msra.mxu0 0.0
    %235 = vmatprep.subr.mxu0 0.0
    %236 = vmatpush1.msra.mxu0 0.0
    %237 = vmatprep.subr.mxu0 0.0
    %238 = vmatpush1.msra.mxu0 0.0
    %239 = vmatprep.subr.mxu0 0.0
    %240 = vmatpush1.msra.mxu0 0.0
    %241 = vmatprep.subr.mxu0 0.0
    %242 = vmatpush1.msra.mxu0 0.0
    %243 = vmatprep.subr.mxu0 0.0
    %244 = vmatpush1.msra.mxu0 0.0
    %245 = vmatprep.subr.mxu0 0.0
    %246 = vmatpush1.msra.mxu0 0.0
    %247 = vmatprep.subr.mxu0 0.0
    %248 = vmatpush1.msra.mxu0 0.0
    %249 = vmatprep.subr.mxu0 0.0
    %250 = vmatpush1.msra.mxu0 0.0
    %251 = vmatprep.mubr.f32.mxu0 0.0
    %252 = vmatmul.mubr.f32.gmra.mrb[0].mxu0 %v185
    %v253 = vpop.f32.mrb[0].mxu0
    %v254 = vadd.f32 %v181, %v253
    %v255 = vpop.f32.mrb[0].mxu0
    %256 = vdwg.mxu0
    %vm257 = vcmask 122880
    %258 = vst.msk [vmem:[#allocation6] sm:$0x1] %vm257, %v254
    // Predicated region
    $region30: #{tpu_custom_call.1} parent=1 // pred_check
      _
    $region31: #{tpu_custom_call.1} parent=1 // pred_check_branch
      %260 = sbr.rel (0) target = $region33
    $region32: #{tpu_custom_call.1} parent=1 // pred_region
      %s262 = ssub.s32 16, 16
      %263 = vsyncadd [#allocation5], %s262
      %s265 = sshll.u32 [#allocation6], 4
      %s266 = int_to_ptr.vmem [resolvable:$true] %s265
      %268 = dma.vmem_to_hbm [thread:$0]  %s266, 16, %s6, [#allocation5]
    $region33: #{tpu_custom_call.1} parent=1 // pred_fallthru
      _
    // Predicated region
    $region34: #{tpu_custom_call.1} parent=1 // pred_check
      _
    $region35: #{tpu_custom_call.1} parent=1 // pred_check_branch
      %270 = sbr.rel (0) target = $region37
    $region36: #{tpu_custom_call.1} parent=1 // pred_region
      %271 = dma.done [#allocation5], 16
    $region37: #{tpu_custom_call.1} parent=1 // pred_fallthru
      _
    %272 = vsyncpa [#allocation4], 1
    %273 = vsyncpa [#allocation5], 1

</llo_original>
